<compile_context>
chip_gen: v7x
topology: tpu7x:2x2x1
jax: 0.10.0
libtpu: 0.0.40
codegen_flags: <defaults>
</compile_context>

<pallas_src>
import functools
import math

import jax
import jax.numpy as jnp
from jax.experimental import pallas as pl
from jax.experimental.pallas import tpu as pltpu


def _round_up(a: int, b: int) -> int:
    return ((a + b - 1) // b) * b


def _pad2(a, rows: int, cols: int):
    pr, pc = rows - a.shape[0], cols - a.shape[1]
    if pr == 0 and pc == 0:
        return a
    return jnp.pad(a, ((0, pr), (0, pc)))


def _fit_tile_and_pad(dim: int, requested: int):
    """Return (padded_dim, tile). tile is a multiple of 128, divides padded_dim, and
    is <= requested in the multi-tile case.  Pads the dimension UP (one-time, offline
    on the weights) rather than shrinking the tile to 128 for awkward sizes, keeping
    output blocks lane-dense and MXU-wide."""
    requested = max(128, _round_up(requested, 128))
    dim_pad = _round_up(dim, 128)
    if dim_pad <= requested:
        return dim_pad, dim_pad  # single full-width tile
    quantum = 128 if requested < 256 else 256
    dim_pad = _round_up(dim_pad, quantum)
    tile = quantum
    t = quantum
    while t <= requested:
        if dim_pad % t == 0:
            tile = t
        t += quantum
    return dim_pad, tile


def _lora_linear_kernel(x_ref, wt_ref, xa_ref, bt_ref, bias_ref, o_ref, acc_ref, *, tk):
    # x_ref:    (tm, K_pad)  resident activation row-panel (compute_dtype)
    # wt_ref:   (tk, tn)     frozen weight tile, transposed (W.T)
    # xa_ref:   (tm, r_pad)  precomputed LoRA down-projection x @ A.T (resident)
    # bt_ref:   (r_pad, tn)  lora_b transposed, LoRA scaling pre-folded
    # bias_ref: (1, tn)      f32 bias
    # acc_ref:  (tm, tn)     f32 accumulator scratch for the base matmul
    k = pl.program_id(2)  # K (reduction) tile index, innermost

    @pl.when(k == 0)
    def _():
        acc_ref[...] = jnp.zeros_like(acc_ref)

    # Slice the (tm, tk) chunk out of the resident x panel (aligned, lane-dense).
    k_start = pl.multiple_of(k * tk, 128)
    x = x_ref[:, pl.ds(k_start, tk)]

    # Base path: accumulate x_tile @ W.T_tile in f32 on the MXU.
    acc_ref[...] += jnp.dot(x, wt_ref[...], preferred_element_type=jnp.float32)

    # Epilogue on the last K step: LoRA up-projection + bias, single write-back.
    @pl.when(k == pl.num_programs(2) - 1)
    def _():
        lora = jnp.dot(xa_ref[...], bt_ref[...], preferred_element_type=jnp.float32)
        o_ref[...] = (acc_ref[...] + bias_ref[...] + lora).astype(o_ref.dtype)


def prepare_lora_params(weight, bias, lora_a, lora_b, *, lora_alpha=1.0,
                        compute_dtype=jnp.bfloat16, tn=512, tk=512):
    """One-time (outside the hot loop) conversion of PyTorch-layout LoRA params.

    weight: (out, in), bias: (out,), lora_a: (r, in), lora_b: (out, r).
    Produces lane-dense, zero-padded (to tile multiples), compute_dtype params with
    the LoRA scaling folded into B.T and the LoRA rank padded to 128 lanes.
    """
    out_f, in_f = weight.shape
    r = lora_a.shape[0]
    scaling = float(lora_alpha) / float(r)
    r_pad = _round_up(max(r, 128), 128)

    k_pad, tk_eff = _fit_tile_and_pad(in_f, tk)
    n_pad, tn_eff = _fit_tile_and_pad(out_f, tn)

    wt = _pad2(weight.T.astype(compute_dtype), k_pad, n_pad)            # (K, N)
    at = _pad2(lora_a.T.astype(compute_dtype), k_pad, r_pad)            # (K, r_pad)
    bt = _pad2((lora_b.T * scaling).astype(compute_dtype), r_pad, n_pad)  # (r_pad, N)
    b2 = _pad2(jnp.reshape(bias, (1, out_f)).astype(jnp.float32), 1, n_pad)  # (1, N)

    return dict(wt=wt, at=at, bt=bt, bias=b2, in_features=in_f, out_features=out_f,
                r=r, r_pad=r_pad, tk=tk_eff, tn=tn_eff, compute_dtype=compute_dtype)


def lora_linear(x, params, *, tm=512, out_dtype=None):
    """x: (..., in_features); params from prepare_lora_params()."""
    in_f = params["in_features"]
    out_f = params["out_features"]
    cdt = params["compute_dtype"]
    wt, at, bt, b2 = params["wt"], params["at"], params["bt"], params["bias"]
    k_pad, n_pad = wt.shape
    r_pad = params["r_pad"]
    tk_eff, tn_eff = params["tk"], params["tn"]

    lead_shape = x.shape[:-1]
    m = math.prod(lead_shape) if lead_shape else 1
    x2 = x.reshape(m, in_f).astype(cdt)

    # bf16 native sublane packing wants >=16 rows; clamp tm to the (padded) M.
    tm_eff = max(16, min(_round_up(tm, 16), _round_up(m, 16)))
    m_pad = _round_up(m, tm_eff)
    x2p = _pad2(x2, m_pad, k_pad)

    # Thin LoRA down-projection precomputed once (M x K x r_pad); removes the A.T
    # stream from the kernel and the old j==0-only coupling (enables N-parallel).
    xa = jnp.dot(x2p, at, preferred_element_type=jnp.float32).astype(cdt)  # (M, r_pad)

    grid = (m_pad // tm_eff, n_pad // tn_eff, k_pad // tk_eff)
    out_dtype = out_dtype or x.dtype
    cbytes = jnp.dtype(cdt).itemsize
    obytes = jnp.dtype(out_dtype).itemsize

    # VMEM working-set estimate (double-buffered pipelined inputs/outputs + scratch).
    # Callers on v7x (64 MiB VMEM) with very large K should shrink tm.
    est = (2 * tm_eff * k_pad * cbytes        # resident x row-panel
           + 2 * tk_eff * tn_eff * cbytes     # W.T tiles
           + 2 * tm_eff * r_pad * cbytes      # xa panel
           + 2 * r_pad * tn_eff * cbytes      # B.T tiles
           + 2 * 8 * tn_eff * 4               # bias (sublane-padded)
           + tm_eff * tn_eff * 4              # f32 accumulator scratch
           + 2 * tm_eff * tn_eff * obytes)    # output tiles
    vmem_limit = int(min(120 * 2**20, max(32 * 2**20, 1.3 * est + 2 * 2**20)))

    kernel = functools.partial(_lora_linear_kernel, tk=tk_eff)

    out2 = pl.pallas_call(
        kernel,
        out_shape=jax.ShapeDtypeStruct((m_pad, n_pad), out_dtype),
        grid_spec=pltpu.PrefetchScalarGridSpec(
            num_scalar_prefetch=0,
            grid=grid,
            in_specs=[
                pl.BlockSpec((tm_eff, k_pad), lambda i, j, k: (i, 0)),    # x (resident)
                pl.BlockSpec((tk_eff, tn_eff), lambda i, j, k: (k, j)),   # W.T
                pl.BlockSpec((tm_eff, r_pad), lambda i, j, k: (i, 0)),    # x @ A.T
                pl.BlockSpec((r_pad, tn_eff), lambda i, j, k: (0, j)),    # B.T * scale
                pl.BlockSpec((1, tn_eff), lambda i, j, k: (0, j)),        # bias
            ],
            out_specs=pl.BlockSpec((tm_eff, tn_eff), lambda i, j, k: (i, j)),
            scratch_shapes=[pltpu.VMEM((tm_eff, tn_eff), jnp.float32)],   # f32 acc
        ),
        compiler_params=pltpu.CompilerParams(
            # M and N both shardable (v7x 2 TCs, also for small-M decode); K is the
            # trailing reduction axis.
            dimension_semantics=("parallel", "parallel", "arbitrary"),
            vmem_limit_bytes=vmem_limit,
        ),
    )(x2p, wt, xa, bt, b2)

    return out2[:m, :out_f].reshape(*lead_shape, out_f)


def _reference(x, weight, bias, lora_a, lora_b, lora_alpha):
    scaling = lora_alpha / lora_a.shape[0]
    return (x @ weight.T + bias) + (x @ lora_a.T @ lora_b.T) * scaling


if __name__ == "__main__":
    key = jax.random.PRNGKey(0)

    # --- Test 1: small shapes consistent with the module (single-tile path) ---
    batch, seq, in_f, out_f, r = 2, 8, 32, 32, 4
    lora_alpha = 1.0
    kx, kw, kb, ka, kbb = jax.random.split(key, 5)
    x = jax.random.normal(kx, (batch, seq, in_f), dtype=jnp.float32)
    weight = jax.random.normal(kw, (out_f, in_f), dtype=jnp.float32) * 0.1
    bias = jax.random.normal(kb, (out_f,), dtype=jnp.float32) * 0.1
    lora_a = jax.random.normal(ka, (r, in_f), dtype=jnp.float32) * 0.1
    # NOTE: the module zero-inits lora_b; nonzero synthetic values so the LoRA
    # path is actually exercised.
    lora_b = jax.random.normal(kbb, (out_f, r), dtype=jnp.float32) * 0.1

    params = prepare_lora_params(weight, bias, lora_a, lora_b, lora_alpha=lora_alpha)
    out = jax.block_until_ready(lora_linear(x, params))
    ref = _reference(x, weight, bias, lora_a, lora_b, lora_alpha)
    assert out.shape == (batch, seq, out_f)
    # bf16 inputs / f32 accumulation -> compare against the f32 reference loosely.
    assert jnp.allclose(out, ref, atol=2e-2, rtol=2e-2), \
        f"max abs err {jnp.max(jnp.abs(out - ref))}"

    # --- Test 2: multi-tile path (exercises M/N/K tiling, f32 accumulation across K,
    # the resident-x reuse across N tiles, and ragged-M padding). Still small/fast. ---
    batch2, seq2, in_f2, out_f2, r2 = 2, 160, 384, 512, 8
    k2 = jax.random.PRNGKey(1)
    kx, kw, kb, ka, kbb = jax.random.split(k2, 5)
    x2 = jax.random.normal(kx, (batch2, seq2, in_f2), dtype=jnp.float32)
    w2 = jax.random.normal(kw, (out_f2, in_f2), dtype=jnp.float32) * 0.02
    b2 = jax.random.normal(kb, (out_f2,), dtype=jnp.float32) * 0.02
    a2 = jax.random.normal(ka, (r2, in_f2), dtype=jnp.float32) * 0.02
    lb2 = jax.random.normal(kbb, (out_f2, r2), dtype=jnp.float32) * 0.02

    params2 = prepare_lora_params(w2, b2, a2, lb2, lora_alpha=2.0, tn=128, tk=128)
    out_big = jax.block_until_ready(lora_linear(x2, params2, tm=128))
    ref_big = _reference(x2, w2, b2, a2, lb2, 2.0)
    assert out_big.shape == (batch2, seq2, out_f2)
    assert jnp.allclose(out_big, ref_big, atol=3e-2, rtol=3e-2), \
        f"max abs err {jnp.max(jnp.abs(out_big - ref_big))}"

    print("KERNEL_OK")
</pallas_src>

<mosaic_0001>
module attributes {stable_mosaic.version = 11 : i64} {
  func.func @_lora_linear_kernel(%arg0: i32, %arg1: i32, %arg2: i32, %arg3: memref<16x128xbf16, #tpu.memory_space<vmem>>, %arg4: memref<128x128xbf16, #tpu.memory_space<vmem>>, %arg5: memref<16x128xbf16, #tpu.memory_space<vmem>>, %arg6: memref<128x128xbf16, #tpu.memory_space<vmem>>, %arg7: memref<1x128xf32, #tpu.memory_space<vmem>>, %arg8: memref<16x128xf32, #tpu.memory_space<vmem>>, %arg9: memref<16x128xf32, #tpu.memory_space<vmem>>) attributes {dimension_semantics = [#tpu.dimension_semantics<parallel>, #tpu.dimension_semantics<parallel>, #tpu.dimension_semantics<arbitrary>], iteration_bounds = array<i64: 1, 1, 1>, scalar_prefetch = 0 : i64, scratch_operands = 1 : i64, tpu.core_type = #tpu.core_type<tc>, window_params = [{transform_indices = @transform_0, window_bounds = array<i64: 16, 128>}, {transform_indices = @transform_1, window_bounds = array<i64: 128, 128>}, {transform_indices = @transform_2, window_bounds = array<i64: 16, 128>}, {transform_indices = @transform_3, window_bounds = array<i64: 128, 128>}, {transform_indices = @transform_4, window_bounds = array<i64: 1, 128>}, {transform_indices = @transform_5, window_bounds = array<i64: 16, 128>}]} {
    %c0_i32 = arith.constant 0 : i32
    %0 = arith.cmpi eq, %arg2, %c0_i32 : i32
    %1 = arith.extui %0 : i1 to i32
    %c0_i32_0 = arith.constant 0 : i32
    %2 = arith.cmpi ne, %1, %c0_i32_0 : i32
    scf.if %2 {
      %cst_9 = arith.constant 0.000000e+00 : f32
      %15 = vector.broadcast %cst_9 : f32 to vector<16x128xf32>
      %c0_10 = arith.constant 0 : index
      %c0_11 = arith.constant 0 : index
      %16 = vector.load %arg9[%c0_10, %c0_11] : memref<16x128xf32, #tpu.memory_space<vmem>>, vector<16x128xf32>
      tpu.vector_store %arg9[%c0_10, %c0_11], %15 {strides = array<i32>} : memref<16x128xf32, #tpu.memory_space<vmem>>, vector<16x128xf32>,
    } else {
    }
    %c128_i32 = arith.constant 128 : i32
    %3 = arith.muli %arg2, %c128_i32 : i32
    %4 = tpu.assume_multiple %3, 128 : i32
    %c0 = arith.constant 0 : index
    %5 = arith.index_cast %4 : i32 to index
    %6 = vector.load %arg3[%c0, %5] : memref<16x128xbf16, #tpu.memory_space<vmem>>, vector<16x128xbf16>
    %c0_1 = arith.constant 0 : index
    %c0_2 = arith.constant 0 : index
    %7 = vector.load %arg9[%c0_1, %c0_2] : memref<16x128xf32, #tpu.memory_space<vmem>>, vector<16x128xf32>
    %c0_3 = arith.constant 0 : index
    %c0_4 = arith.constant 0 : index
    %8 = vector.load %arg4[%c0_3, %c0_4] : memref<128x128xbf16, #tpu.memory_space<vmem>>, vector<128x128xbf16>
    %cst = arith.constant dense<0.000000e+00> : vector<16x128xf32>
    %9 = tpu.matmul %6, %8, %cst {dimension_numbers = #tpu.dot_dimension_numbers<[1], [0], [0], [1], [0, 0, 1, 1], [], []>} : vector<16x128xbf16>, vector<128x128xbf16>, vector<16x128xf32> -> vector<16x128xf32>
    %10 = arith.addf %7, %9 : vector<16x128xf32>
    %c0_5 = arith.constant 0 : index
    %c0_6 = arith.constant 0 : index
    %11 = vector.load %arg9[%c0_5, %c0_6] : memref<16x128xf32, #tpu.memory_space<vmem>>, vector<16x128xf32>
    tpu.vector_store %arg9[%c0_5, %c0_6], %10 {strides = array<i32>} : memref<16x128xf32, #tpu.memory_space<vmem>>, vector<16x128xf32>,
    %c0_i32_7 = arith.constant 0 : i32
    %12 = arith.cmpi eq, %arg2, %c0_i32_7 : i32
    %13 = arith.extui %12 : i1 to i32
    %c0_i32_8 = arith.constant 0 : i32
    %14 = arith.cmpi ne, %13, %c0_i32_8 : i32
    scf.if %14 {
      %c0_9 = arith.constant 0 : index
      %c0_10 = arith.constant 0 : index
      %15 = vector.load %arg5[%c0_9, %c0_10] : memref<16x128xbf16, #tpu.memory_space<vmem>>, vector<16x128xbf16>
      %c0_11 = arith.constant 0 : index
      %c0_12 = arith.constant 0 : index
      %16 = vector.load %arg6[%c0_11, %c0_12] : memref<128x128xbf16, #tpu.memory_space<vmem>>, vector<128x128xbf16>
      %cst_13 = arith.constant dense<0.000000e+00> : vector<16x128xf32>
      %17 = tpu.matmul %15, %16, %cst_13 {dimension_numbers = #tpu.dot_dimension_numbers<[1], [0], [0], [1], [0, 0, 1, 1], [], []>} : vector<16x128xbf16>, vector<128x128xbf16>, vector<16x128xf32> -> vector<16x128xf32>
      %c0_14 = arith.constant 0 : index
      %c0_15 = arith.constant 0 : index
      %18 = vector.load %arg9[%c0_14, %c0_15] : memref<16x128xf32, #tpu.memory_space<vmem>>, vector<16x128xf32>
      %c0_16 = arith.constant 0 : index
      %c0_17 = arith.constant 0 : index
      %19 = vector.load %arg7[%c0_16, %c0_17] : memref<1x128xf32, #tpu.memory_space<vmem>>, vector<1x128xf32>
      %20 = vector.broadcast %19 : vector<1x128xf32> to vector<16x128xf32>
      %21 = arith.addf %18, %20 : vector<16x128xf32>
      %22 = arith.addf %21, %17 : vector<16x128xf32>
      %c0_18 = arith.constant 0 : index
      %c0_19 = arith.constant 0 : index
      %23 = vector.load %arg8[%c0_18, %c0_19] : memref<16x128xf32, #tpu.memory_space<vmem>>, vector<16x128xf32>
      tpu.vector_store %arg8[%c0_18, %c0_19], %22 {strides = array<i32>} : memref<16x128xf32, #tpu.memory_space<vmem>>, vector<16x128xf32>,
    } else {
    }
    return
  }
  func.func @transform_0(%arg0: i32, %arg1: i32, %arg2: i32) -> (i32, i32) {
    %c0_i32 = arith.constant 0 : i32
    %c0_i32_0 = arith.constant 0 : i32
    return %arg0, %c0_i32 : i32, i32
  }
  func.func @transform_1(%arg0: i32, %arg1: i32, %arg2: i32) -> (i32, i32) {
    %c0_i32 = arith.constant 0 : i32
    return %arg2, %arg1 : i32, i32
  }
  func.func @transform_2(%arg0: i32, %arg1: i32, %arg2: i32) -> (i32, i32) {
    %c0_i32 = arith.constant 0 : i32
    %c0_i32_0 = arith.constant 0 : i32
    return %arg0, %c0_i32 : i32, i32
  }
  func.func @transform_3(%arg0: i32, %arg1: i32, %arg2: i32) -> (i32, i32) {
    %c0_i32 = arith.constant 0 : i32
    %c0_i32_0 = arith.constant 0 : i32
    return %c0_i32, %arg1 : i32, i32
  }
  func.func @transform_4(%arg0: i32, %arg1: i32, %arg2: i32) -> (i32, i32) {
    %c0_i32 = arith.constant 0 : i32
    %c0_i32_0 = arith.constant 0 : i32
    return %c0_i32, %arg1 : i32, i32
  }
  func.func @transform_5(%arg0: i32, %arg1: i32, %arg2: i32) -> (i32, i32) {
    %c0_i32 = arith.constant 0 : i32
    return %arg0, %arg1 : i32, i32
  }
}

</mosaic_0001>

<llo_original>
// kernel: tpu_custom_call.1
$region0: #{tpu_custom_call.1}
  #allocation0 [shape = 'u32[]', space=smem, size = 0x4, offset = 0x4, fixed_abs, tag = 'smem constant byte address 0x4 - core index']
  #allocation1 [shape = 'u32[144,128]{1,0:T(1,128)}', space=vmem, size = 0x12000, scoped, tag = 'internal scratch']
  #allocation2 [shape = 'f32[16,128]{1,0:T(8,128)}', space=vmem, size = 0x2000, scoped, tag = 'scratch operand']
  %s0 = inlined_call_operand.hbm [shape: bf16[16,128], index: 0, kind: input, shape index: {}]
  %s1 = inlined_call_operand.hbm [shape: bf16[128,128], index: 1, kind: input, shape index: {}]
  %s2 = inlined_call_operand.hbm [shape: bf16[16,128], index: 2, kind: input, shape index: {}]
  %s3 = inlined_call_operand.hbm [shape: bf16[128,128], index: 3, kind: input, shape index: {}]
  %s4 = inlined_call_operand.vmem [shape: f32[1,128], index: 4, kind: input, shape index: {}]
  %s5 = inlined_call_operand.hbm [shape: f32[16,128], index: 5, kind: output, shape index: {}]
  %s6 = sld [smem:[#allocation0]]
  $region54: #{tpu_custom_call.1} parent=0
    _
  %s8 = ssub.s32 1, %s6
  %s9 = scalar_select 0, %s8, %s6
  $region1: #{tpu_custom_call.1} parent=0
    #allocation3 [shape = 'u8[4096]{0}', space=vmem, size = 0x1000, scoped, tag = 'input window, operand 0, single buffered']
    #allocation4 [shape = 's32[1]{0}', space=sflag, size = 0x4, scoped, tag = 'scoped memory for tpu_custom_call.1']
    #allocation5 [shape = 's32[1]{0}', space=sflag, size = 0x4, scoped, tag = 'scoped memory for tpu_custom_call.1']
    #allocation6 [shape = 'u8[32768]{0}', space=vmem, size = 0x8000, scoped, tag = 'input window, operand 1, single buffered']
    #allocation7 [shape = 's32[1]{0}', space=sflag, size = 0x4, scoped, tag = 'scoped memory for tpu_custom_call.1']
    #allocation8 [shape = 'u8[4096]{0}', space=vmem, size = 0x1000, scoped, tag = 'input window, operand 2, single buffered']
    #allocation9 [shape = 'u8[32768]{0}', space=vmem, size = 0x8000, scoped, tag = 'input window, operand 3, single buffered']
    #allocation10 [shape = 's32[1]{0}', space=sflag, size = 0x4, scoped, tag = 'scoped memory for tpu_custom_call.1']
    #allocation11 [shape = 'u8[8192]{0}', space=vmem, size = 0x2000, scoped, tag = 'output window, operand 0, single buffered']
    %10 = vsyncpa [#allocation4], 0
    %11 = vsyncpa [#allocation7], 0
    %12 = vsyncpa [#allocation10], 0
    %13 = vsyncpa [#allocation5], 0
    // Predicated region
    $region2: #{tpu_custom_call.1} parent=1 // pred_check
      _
    $region3: #{tpu_custom_call.1} parent=1 // pred_check_branch
      %15 = sbr.rel (0) target = $region5
    $region4: #{tpu_custom_call.1} parent=1 // pred_region
      %s17 = ssub.s32 128, 128
      %18 = vsyncadd [#allocation4], %s17
      %s19 = sshll.u32 [#allocation3], 4
      %s20 = int_to_ptr.vmem [resolvable:$true] %s19
      %25 = dma.hbm_to_vmem [thread:$0]  %s0, 128, %s20, [#allocation4], 64, 64, 4
    $region5: #{tpu_custom_call.1} parent=1 // pred_fallthru
      _
    // Predicated region
    $region6: #{tpu_custom_call.1} parent=1 // pred_check
      _
    $region7: #{tpu_custom_call.1} parent=1 // pred_check_branch
      %27 = sbr.rel (0) target = $region9
    $region8: #{tpu_custom_call.1} parent=1 // pred_region
      %s29 = ssub.s32 1024, 1024
      %30 = vsyncadd [#allocation7], %s29
      %s31 = sshll.u32 [#allocation6], 4
      %s32 = int_to_ptr.vmem [resolvable:$true] %s31
      %37 = dma.hbm_to_vmem [thread:$0]  %s1, 1024, %s32, [#allocation7], 64, 64, 4
    $region9: #{tpu_custom_call.1} parent=1 // pred_fallthru
      _
    // Predicated region
    $region10: #{tpu_custom_call.1} parent=1 // pred_check
      _
    $region11: #{tpu_custom_call.1} parent=1 // pred_check_branch
      %39 = sbr.rel (0) target = $region13
    $region12: #{tpu_custom_call.1} parent=1 // pred_region
      %s41 = ssub.s32 128, 128
      %42 = vsyncadd [#allocation7], %s41
      %s43 = sshll.u32 [#allocation8], 4
      %s44 = int_to_ptr.vmem [resolvable:$true] %s43
      %49 = dma.hbm_to_vmem [thread:$0]  %s2, 128, %s44, [#allocation7], 64, 64, 4
    $region13: #{tpu_custom_call.1} parent=1 // pred_fallthru
      _
    // Predicated region
    $region14: #{tpu_custom_call.1} parent=1 // pred_check
      _
    $region15: #{tpu_custom_call.1} parent=1 // pred_check_branch
      %51 = sbr.rel (0) target = $region17
    $region16: #{tpu_custom_call.1} parent=1 // pred_region
      %s53 = ssub.s32 1024, 1024
      %54 = vsyncadd [#allocation10], %s53
      %s55 = sshll.u32 [#allocation9], 4
      %s56 = int_to_ptr.vmem [resolvable:$true] %s55
      %61 = dma.hbm_to_vmem [thread:$0]  %s3, 1024, %s56, [#allocation10], 64, 64, 4
    $region17: #{tpu_custom_call.1} parent=1 // pred_fallthru
      _
    // Predicated region
    $region18: #{tpu_custom_call.1} parent=1 // pred_check
      _
    $region19: #{tpu_custom_call.1} parent=1 // pred_check_branch
      %63 = sbr.rel (0) target = $region21
    $region20: #{tpu_custom_call.1} parent=1 // pred_region
      _
    $region21: #{tpu_custom_call.1} parent=1 // pred_fallthru
      _
    // Predicated region
    $region22: #{tpu_custom_call.1} parent=1 // pred_check
      _
    $region23: #{tpu_custom_call.1} parent=1 // pred_check_branch
      %65 = sbr.rel (0) target = $region25
    $region24: #{tpu_custom_call.1} parent=1 // pred_region
      %66 = dma.done [#allocation4], 128
    $region25: #{tpu_custom_call.1} parent=1 // pred_fallthru
      _
    // Predicated region
    $region26: #{tpu_custom_call.1} parent=1 // pred_check
      _
    $region27: #{tpu_custom_call.1} parent=1 // pred_check_branch
      %68 = sbr.rel (0) target = $region29
    $region28: #{tpu_custom_call.1} parent=1 // pred_region
      %69 = dma.done [#allocation7], 1024
    $region29: #{tpu_custom_call.1} parent=1 // pred_fallthru
      _
    // Predicated region
    $region30: #{tpu_custom_call.1} parent=1 // pred_check
      _
    $region31: #{tpu_custom_call.1} parent=1 // pred_check_branch
      %71 = sbr.rel (0) target = $region33
    $region32: #{tpu_custom_call.1} parent=1 // pred_region
      %72 = dma.done [#allocation7], 128
    $region33: #{tpu_custom_call.1} parent=1 // pred_fallthru
      _
    // Predicated region
    $region34: #{tpu_custom_call.1} parent=1 // pred_check
      _
    $region35: #{tpu_custom_call.1} parent=1 // pred_check_branch
      %74 = sbr.rel (0) target = $region37
    $region36: #{tpu_custom_call.1} parent=1 // pred_region
      %75 = dma.done [#allocation10], 1024
    $region37: #{tpu_custom_call.1} parent=1 // pred_fallthru
      _
    %p77 = scmp.eq.s32.totalorder 0, 0
    // Predicated region
    $region38: #{tpu_custom_call.1} parent=1 // pred_check
      %p78 = pneg %p77
    $region39: #{tpu_custom_call.1} parent=1 // pred_check_branch
      %80 = sbr.rel (%p78) target = $region41
    $region40: #{tpu_custom_call.1} parent=1 // pred_region
      %81 = vst [vmem:[#allocation2] sm:$0xff] 0.0
      %82 = vst [vmem:[#allocation2 + $0x8] sm:$0xff] 0.0
    $region41: #{tpu_custom_call.1} parent=1 // pred_fallthru
      _
    %s83 = smul.u32 0, 128
    %s84 = sshra.s32 %s83, 7
    %s85 = sand.u32 %s83, 127
    %s86 = smul.addr %s84, 4
    %s87 = scalar_lea.vmem [#allocation3], %s86
    %v88 = vld [vmem:[%s87] sm:$0xf]
    %v89 = vld [vmem:[%s87 + $0x4] sm:$0xf]
    %v90 = vld [vmem:[#allocation2] sm:$0xff]
    %v91 = vld [vmem:[#allocation2 + $0x8] sm:$0xff]
    %v92 = vld [vmem:[#allocation6] sm:$0xf]
    %v93 = vld [vmem:[#allocation6 + $0x4] sm:$0xf]
    %v94 = vld [vmem:[#allocation6 + $0x8] sm:$0xf]
    %v95 = vld [vmem:[#allocation6 + $0xc] sm:$0xf]
    %v96 = vld [vmem:[#allocation6 + $0x10] sm:$0xf]
    %v97 = vld [vmem:[#allocation6 + $0x14] sm:$0xf]
    %v98 = vld [vmem:[#allocation6 + $0x18] sm:$0xf]
    %v99 = vld [vmem:[#allocation6 + $0x1c] sm:$0xf]
    %v100 = vld [vmem:[#allocation6 + $0x20] sm:$0xf]
    %v101 = vld [vmem:[#allocation6 + $0x24] sm:$0xf]
    %v102 = vld [vmem:[#allocation6 + $0x28] sm:$0xf]
    %v103 = vld [vmem:[#allocation6 + $0x2c] sm:$0xf]
    %v104 = vld [vmem:[#allocation6 + $0x30] sm:$0xf]
    %v105 = vld [vmem:[#allocation6 + $0x34] sm:$0xf]
    %v106 = vld [vmem:[#allocation6 + $0x38] sm:$0xf]
    %v107 = vld [vmem:[#allocation6 + $0x3c] sm:$0xf]
    %v110 = vunpack.c.l.b16 %v88
    %v111 = vunpack.c.l.b16 %v89
    %v112 = vpack.c.b16 %v111, %v110
    %v130 = vunpack.c.l.b16 %v92
    %v131 = vunpack.c.l.b16 %v93
    %v132 = vunpack.c.l.b16 %v94
    %v133 = vunpack.c.l.b16 %v95
    %v134 = vunpack.c.l.b16 %v96
    %v135 = vunpack.c.l.b16 %v97
    %v136 = vunpack.c.l.b16 %v98
    %v137 = vunpack.c.l.b16 %v99
    %v138 = vunpack.c.l.b16 %v100
    %v139 = vunpack.c.l.b16 %v101
    %v140 = vunpack.c.l.b16 %v102
    %v141 = vunpack.c.l.b16 %v103
    %v142 = vunpack.c.l.b16 %v104
    %v143 = vunpack.c.l.b16 %v105
    %v144 = vunpack.c.l.b16 %v106
    %v145 = vunpack.c.l.b16 %v107
    %v146 = vpack.c.b16 %v131, %v130
    %v147 = vpack.c.b16 %v133, %v132
    %v148 = vpack.c.b16 %v135, %v134
    %v149 = vpack.c.b16 %v137, %v136
    %v150 = vpack.c.b16 %v139, %v138
    %v151 = vpack.c.b16 %v141, %v140
    %v152 = vpack.c.b16 %v143, %v142
    %v153 = vpack.c.b16 %v145, %v144
    %162 = vmatprep.subr.bf16.mxu0 0
    %163 = vmatpush1.bf16.msra.mxu0 %v146
    %164 = vmatprep.subr.bf16.mxu0 0
    %165 = vmatpush1.bf16.msra.mxu0 %v147
    %166 = vmatprep.subr.bf16.mxu0 0
    %167 = vmatpush1.bf16.msra.mxu0 %v148
    %168 = vmatprep.subr.bf16.mxu0 0
    %169 = vmatpush1.bf16.msra.mxu0 %v149
    %170 = vmatprep.subr.bf16.mxu0 0
    %171 = vmatpush1.bf16.msra.mxu0 %v150
    %172 = vmatprep.subr.bf16.mxu0 0
    %173 = vmatpush1.bf16.msra.mxu0 %v151
    %174 = vmatprep.subr.bf16.mxu0 0
    %175 = vmatpush1.bf16.msra.mxu0 %v152
    %176 = vmatprep.subr.bf16.mxu0 0
    %177 = vmatpush1.bf16.msra.mxu0 %v153
    %178 = vmatprep.subr.bf16.mxu0 0
    %179 = vmatpush1.bf16.msra.mxu0 0
    %180 = vmatprep.subr.bf16.mxu0 0
    %181 = vmatpush1.bf16.msra.mxu0 0
    %182 = vmatprep.subr.bf16.mxu0 0
    %183 = vmatpush1.bf16.msra.mxu0 0
    %184 = vmatprep.subr.bf16.mxu0 0
    %185 = vmatpush1.bf16.msra.mxu0 0
    %186 = vmatprep.subr.bf16.mxu0 0
    %187 = vmatpush1.bf16.msra.mxu0 0
    %188 = vmatprep.subr.bf16.mxu0 0
    %189 = vmatpush1.bf16.msra.mxu0 0
    %190 = vmatprep.subr.bf16.mxu0 0
    %191 = vmatpush1.bf16.msra.mxu0 0
    %192 = vmatprep.subr.bf16.mxu0 0
    %193 = vmatpush1.bf16.msra.mxu0 0
    %194 = vmatprep.mubr.bf16.mxu0 0
    %195 = vmatmul.mubr.bf16.gmra.mrb[0].mxu0 %v112
    %v196 = vpop.f32.mrb[0].mxu0
    %v197 = vadd.f32 0.0, %v196
    %v198 = vpop.f32.mrb[0].mxu0
    %v199 = vpop.f32.mrb[0].mxu0
    %v200 = vadd.f32 0.0, %v199
    %v201 = vpop.f32.mrb[0].mxu0
    %202 = vdwg.mxu0
    %v203 = vadd.f32 %v90, %v197
    %v204 = vadd.f32 %v91, %v200
    %205 = vst [vmem:[#allocation2] sm:$0xff] %v203
    %206 = vst [vmem:[#allocation2 + $0x8] sm:$0xff] %v204
    // Predicated region
    $region42: #{tpu_custom_call.1} parent=1 // pred_check
      %p207 = pneg %p77
    $region43: #{tpu_custom_call.1} parent=1 // pred_check_branch
      %209 = sbr.rel (%p207) target = $region45
    $region44: #{tpu_custom_call.1} parent=1 // pred_region
      %v210 = vld [vmem:[#allocation8] sm:$0xf]
      %v211 = vld [vmem:[#allocation8 + $0x4] sm:$0xf]
      %v212 = vld [vmem:[#allocation9] sm:$0xf]
      %v213 = vld [vmem:[#allocation9 + $0x4] sm:$0xf]
      %v214 = vld [vmem:[#allocation9 + $0x8] sm:$0xf]
      %v215 = vld [vmem:[#allocation9 + $0xc] sm:$0xf]
      %v216 = vld [vmem:[#allocation9 + $0x10] sm:$0xf]
      %v217 = vld [vmem:[#allocation9 + $0x14] sm:$0xf]
      %v218 = vld [vmem:[#allocation9 + $0x18] sm:$0xf]
      %v219 = vld [vmem:[#allocation9 + $0x1c] sm:$0xf]
      %v220 = vld [vmem:[#allocation9 + $0x20] sm:$0xf]
      %v221 = vld [vmem:[#allocation9 + $0x24] sm:$0xf]
      %v222 = vld [vmem:[#allocation9 + $0x28] sm:$0xf]
      %v223 = vld [vmem:[#allocation9 + $0x2c] sm:$0xf]
      %v224 = vld [vmem:[#allocation9 + $0x30] sm:$0xf]
      %v225 = vld [vmem:[#allocation9 + $0x34] sm:$0xf]
      %v226 = vld [vmem:[#allocation9 + $0x38] sm:$0xf]
      %v227 = vld [vmem:[#allocation9 + $0x3c] sm:$0xf]
      %v230 = vunpack.c.l.b16 %v210
      %v231 = vunpack.c.l.b16 %v211
      %v232 = vpack.c.b16 %v231, %v230
      %v250 = vunpack.c.l.b16 %v212
      %v251 = vunpack.c.l.b16 %v213
      %v252 = vunpack.c.l.b16 %v214
      %v253 = vunpack.c.l.b16 %v215
      %v254 = vunpack.c.l.b16 %v216
      %v255 = vunpack.c.l.b16 %v217
      %v256 = vunpack.c.l.b16 %v218
      %v257 = vunpack.c.l.b16 %v219
      %v258 = vunpack.c.l.b16 %v220
      %v259 = vunpack.c.l.b16 %v221
      %v260 = vunpack.c.l.b16 %v222
      %v261 = vunpack.c.l.b16 %v223
      %v262 = vunpack.c.l.b16 %v224
      %v263 = vunpack.c.l.b16 %v225
      %v264 = vunpack.c.l.b16 %v226
      %v265 = vunpack.c.l.b16 %v227
      %v266 = vpack.c.b16 %v251, %v250
      %v267 = vpack.c.b16 %v253, %v252
      %v268 = vpack.c.b16 %v255, %v254
      %v269 = vpack.c.b16 %v257, %v256
      %v270 = vpack.c.b16 %v259, %v258
      %v271 = vpack.c.b16 %v261, %v260
      %v272 = vpack.c.b16 %v263, %v262
      %v273 = vpack.c.b16 %v265, %v264
      %282 = vmatprep.subr.bf16.mxu0 0
      %283 = vmatpush1.bf16.msra.mxu0 %v266
      %284 = vmatprep.subr.bf16.mxu0 0
      %285 = vmatpush1.bf16.msra.mxu0 %v267
      %286 = vmatprep.subr.bf16.mxu0 0
      %287 = vmatpush1.bf16.msra.mxu0 %v268
      %288 = vmatprep.subr.bf16.mxu0 0
      %289 = vmatpush1.bf16.msra.mxu0 %v269
      %290 = vmatprep.subr.bf16.mxu0 0
      %291 = vmatpush1.bf16.msra.mxu0 %v270
      %292 = vmatprep.subr.bf16.mxu0 0
      %293 = vmatpush1.bf16.msra.mxu0 %v271
      %294 = vmatprep.subr.bf16.mxu0 0
      %295 = vmatpush1.bf16.msra.mxu0 %v272
      %296 = vmatprep.subr.bf16.mxu0 0
      %297 = vmatpush1.bf16.msra.mxu0 %v273
      %298 = vmatprep.subr.bf16.mxu0 0
      %299 = vmatpush1.bf16.msra.mxu0 0
      %300 = vmatprep.subr.bf16.mxu0 0
      %301 = vmatpush1.bf16.msra.mxu0 0
      %302 = vmatprep.subr.bf16.mxu0 0
      %303 = vmatpush1.bf16.msra.mxu0 0
      %304 = vmatprep.subr.bf16.mxu0 0
      %305 = vmatpush1.bf16.msra.mxu0 0
      %306 = vmatprep.subr.bf16.mxu0 0
      %307 = vmatpush1.bf16.msra.mxu0 0
      %308 = vmatprep.subr.bf16.mxu0 0
      %309 = vmatpush1.bf16.msra.mxu0 0
      %310 = vmatprep.subr.bf16.mxu0 0
      %311 = vmatpush1.bf16.msra.mxu0 0
      %312 = vmatprep.subr.bf16.mxu0 0
      %313 = vmatpush1.bf16.msra.mxu0 0
      %314 = vmatprep.mubr.bf16.mxu0 0
      %315 = vmatmul.mubr.bf16.gmra.mrb[0].mxu0 %v232
      %v316 = vpop.f32.mrb[0].mxu0
      %v317 = vadd.f32 0.0, %v316
      %v318 = vpop.f32.mrb[0].mxu0
      %v319 = vpop.f32.mrb[0].mxu0
      %v320 = vadd.f32 0.0, %v319
      %v321 = vpop.f32.mrb[0].mxu0
      %322 = vdwg.mxu0
      %v323 = vld [vmem:[#allocation2] sm:$0xff]
      %v324 = vld [vmem:[#allocation2 + $0x8] sm:$0xff]
      %v325 = vld [vmem:[%s4] sm:$0x1]
      %v327 = vlaneseq
      %v328 = vshrl.u32 %v327, 7
      %v329 = vsub.s32 0, %v328
      %v330 = vrot.slane %v325, %v329
      %v332 = vadd.f32 %v323, %v330
      %v333 = vadd.f32 %v324, %v330
      %v334 = vadd.f32 %v332, %v317
      %v335 = vadd.f32 %v333, %v320
      %336 = vst [vmem:[#allocation11] sm:$0xff] %v334
      %337 = vst [vmem:[#allocation11 + $0x8] sm:$0xff] %v335
    $region45: #{tpu_custom_call.1} parent=1 // pred_fallthru
      _
    // Predicated region
    $region46: #{tpu_custom_call.1} parent=1 // pred_check
      _
    $region47: #{tpu_custom_call.1} parent=1 // pred_check_branch
      %339 = sbr.rel (0) target = $region49
    $region48: #{tpu_custom_call.1} parent=1 // pred_region
      %s341 = ssub.s32 256, 256
      %342 = vsyncadd [#allocation5], %s341
      %s343 = sshll.u32 [#allocation11], 4
      %s344 = int_to_ptr.vmem [resolvable:$true] %s343
      %349 = dma.vmem_to_hbm [thread:$0]  %s344, 256, %s5, [#allocation5], 128, 128, 8
    $region49: #{tpu_custom_call.1} parent=1 // pred_fallthru
      _
    // Predicated region
    $region50: #{tpu_custom_call.1} parent=1 // pred_check
      _
    $region51: #{tpu_custom_call.1} parent=1 // pred_check_branch
      %351 = sbr.rel (0) target = $region53
    $region52: #{tpu_custom_call.1} parent=1 // pred_region
      %352 = dma.done [#allocation5], 256
    $region53: #{tpu_custom_call.1} parent=1 // pred_fallthru
      _
    %353 = vsyncpa [#allocation4], 1
    %354 = vsyncpa [#allocation7], 1
    %355 = vsyncpa [#allocation10], 1
    %356 = vsyncpa [#allocation5], 1

</llo_original>
